<compile_context>
chip_gen: v7x
topology: tpu7x:2x2x1
jax: 0.10.0
libtpu: 0.0.40
codegen_flags: <defaults>
</compile_context>

<pallas_src>
import jax
import jax.numpy as jnp
from jax.experimental import pallas as pl
from jax.experimental.pallas import tpu as pltpu


def _reg3d_kernel(x_ref, w1t_ref, b1_ref, w2t_ref, b2_ref, w3_ref, b3_ref, o_ref):
    x = x_ref[...]          # (3, tile_n)   batch on lanes; f32 or bf16
    w1t = w1t_ref[...]      # (64, 3)       same dtype as x

    # fc1 (in=3): three broadcast-FMAs on the VPU (packed bf16 on v6e/v7x when
    # the bf16 path is enabled) instead of a padded MXU matmul.
    # TODO(synk): if a bundle dump shows the VALU slot saturating first, fold b1
    # into a (64,4) weight + a ones row and move fc1 onto the MXU instead.
    h1 = (w1t[:, 0:1] * x[0:1, :]
          + w1t[:, 1:2] * x[1:2, :]
          + w1t[:, 2:3] * x[2:3, :]
          + b1_ref[...])                               # (64, tile_n)
    h1 = jnp.maximum(h1, 0.0)

    # fc2 (64 -> 32): the only "real" matmul, on the MXU, always f32 accumulation.
    h2 = jnp.dot(w2t_ref[...], h1, preferred_element_type=jnp.float32)
    h2 = jnp.maximum(h2 + b2_ref[...], 0.0)            # (32, tile_n) f32

    # fc3 (32 -> 1): VPU multiply + sublane reduction (XLU), f32.
    out = jnp.sum(w3_ref[...] * h2, axis=0, keepdims=True) + b3_ref[...]  # (1, tile_n)
    o_ref[...] = out.astype(o_ref.dtype)


# Per-step temps at this cap stay well under ~14 MiB f32 (~9 MiB bf16), i.e.
# comfortably inside v7x's 64 MiB per-TC VMEM with double buffering.
_MAX_TILE_N = 32768


def _pick_tile_n(n):
    """Large lane tiles (amortize the ~0.35us per-grid-step overhead), sized
    relative to N so pad waste stays small, preferring an even number of >=2
    grid steps so the "parallel" axis shards across v7x's two TensorCores."""
    if n <= 256:
        return 128
    n_steps = max(2, pl.cdiv(n, _MAX_TILE_N))
    if n_steps % 2:
        n_steps += 1
    tile = pl.cdiv(pl.cdiv(n, n_steps), 128) * 128
    return int(max(128, min(tile, _MAX_TILE_N)))


def _vmem_limit_bytes(tile_n, act_bytes):
    """Per-step VMEM footprint with ~2x headroom, clamped to a v7x-safe ceiling."""
    x_tiles = 2 * 3 * tile_n * act_bytes        # double-buffered input tile
    o_tiles = 2 * 1 * tile_n * 4                # double-buffered f32 output tile
    h1 = 64 * tile_n * act_bytes                # fc1 activation
    h2 = 32 * tile_n * 4                        # fc2 activation (f32 accum)
    weights = 64 * 1024                         # all weights/biases, generous
    need = x_tiles + o_tiles + h1 + h2 + weights
    return int(min(max(2 * need, 32 * 1024 * 1024), 64 * 1024 * 1024))


def reg3d_forward(x, params, *, tile_n=None, use_bf16=False, x_in_lanes=False):
    """Forward pass of Reg3D.

    x: [N, 3] float32 (or [3, N] if x_in_lanes=True, skipping the relayout).
    params: dict of w1,b1,w2,b2,w3,b3 stored (in, out) like nn.Linear.T.
    use_bf16: run fc1/fc2 operands in bf16 (f32 accumulation / bias / output);
              recommended on v6e/v7x (bf16-native VALU/MXU), also halves the h1
              store stream that can bind v5e's single vst slot.
    """
    if x_in_lanes:
        assert x.ndim == 2 and x.shape[0] == 3
        x_t = x                                   # already (3, N): no relayout
        N = x.shape[1]
    else:
        N, F = x.shape
        assert F == 3
        x_t = x.T                                 # (3, N); fuses under jit

    if tile_n is None:
        tile_n = _pick_tile_n(N)
    assert tile_n >= 128 and tile_n % 128 == 0, "tile_n must be a multiple of 128"

    n_pad = pl.cdiv(N, tile_n) * tile_n
    grid = (n_pad // tile_n,)

    act_dtype = jnp.bfloat16 if use_bf16 else x.dtype
    act_bytes = jnp.dtype(act_dtype).itemsize

    # Wrapper-side plumbing (layout only): pad the batch onto the lane axis,
    # cast fc1/fc2 operands to the compute dtype, pre-transpose weights.  Under
    # jit the pad/transpose/cast fuse into one copy pass; x_in_lanes=True skips
    # even that for the big x array.
    # TODO(synk): the relayout could also be done fully in-kernel with a
    # stride-3 DMA from an (N, 3) HBM ref (memory_space=pl.ANY) to drop the
    # remaining extra HBM pass.
    x_t = jnp.pad(x_t, ((0, 0), (0, n_pad - N))).astype(act_dtype)    # (3, n_pad)
    w1_t = params["w1"].T.astype(act_dtype)                           # (64, 3)
    b1_c = params["b1"].reshape(64, 1).astype(act_dtype)              # (64, 1)
    w2_t = params["w2"].T.astype(act_dtype)                           # (32, 64)
    b2_c = params["b2"].reshape(32, 1).astype(jnp.float32)            # (32, 1)
    w3_c = params["w3"].reshape(32, 1).astype(jnp.float32)            # (32, 1)
    b3_c = params["b3"].reshape(1, 1).astype(jnp.float32)             # (1, 1)

    # Weights/biases are tiny and constant across grid steps: full-array blocks,
    # fetched once and kept resident.
    def full_spec(arr):
        return pl.BlockSpec(arr.shape, lambda i: (0, 0))

    flops = 2 * n_pad * (3 * 64 + 64 * 32 + 32 * 1)
    bytes_accessed = (n_pad * 3 * act_bytes + n_pad * 4
                      + (64 * 3 + 64 + 32 * 64) * act_bytes
                      + (32 + 32 + 1) * 4)

    out = pl.pallas_call(
        _reg3d_kernel,
        out_shape=jax.ShapeDtypeStruct((1, n_pad), jnp.float32),
        grid_spec=pltpu.PrefetchScalarGridSpec(
            num_scalar_prefetch=0,
            grid=grid,
            in_specs=[
                pl.BlockSpec((3, tile_n), lambda i: (0, i)),      # x tile (lane-dense)
                full_spec(w1_t), full_spec(b1_c),
                full_spec(w2_t), full_spec(b2_c),
                full_spec(w3_c), full_spec(b3_c),
            ],
            out_specs=pl.BlockSpec((1, tile_n), lambda i: (0, i)),  # lane-dense output
        ),
        compiler_params=pltpu.CompilerParams(
            dimension_semantics=("parallel",),
            vmem_limit_bytes=_vmem_limit_bytes(tile_n, act_bytes),
        ),
        cost_estimate=pl.CostEstimate(
            flops=flops, transcendentals=0, bytes_accessed=bytes_accessed),
    )(x_t, w1_t, b1_c, w2_t, b2_c, w3_c, b3_c)

    # Back to the module's [N, 1] convention; drop padded columns.
    return out[0, :N].reshape(N, 1)


def init_params(key):
    """Deterministic synthetic init matching nn.Linear shapes (stored (in, out))."""
    k1, k2, k3, k4, k5, k6 = jax.random.split(key, 6)

    def uniform(k, shape, fan_in):
        bound = 1.0 / jnp.sqrt(fan_in)
        return jax.random.uniform(k, shape, jnp.float32, -bound, bound)

    return {
        "w1": uniform(k1, (3, 64), 3),
        "b1": uniform(k2, (1, 64), 3),
        "w2": uniform(k3, (64, 32), 64),
        "b2": uniform(k4, (1, 32), 64),
        "w3": uniform(k5, (32, 1), 32),
        "b3": uniform(k6, (1, 1), 32),
    }


def _reference(x, p):
    h1 = jnp.maximum(x @ p["w1"] + p["b1"], 0.0)
    h2 = jnp.maximum(h1 @ p["w2"] + p["b2"], 0.0)
    return h2 @ p["w3"] + p["b3"]


if __name__ == "__main__":
    key = jax.random.PRNGKey(0)
    kx, kp = jax.random.split(key)

    N = 1024  # batch of 3-D points; default tiling -> tile_n=512, grid=(2,)
    x = jax.random.normal(kx, (N, 3), jnp.float32)
    params = init_params(kp)

    fwd = jax.jit(reg3d_forward,
                  static_argnames=("tile_n", "use_bf16", "x_in_lanes"))
    ref = _reference(x, params)

    # f32 path (default): tight tolerance against the f32 reference.
    out_f32 = jax.block_until_ready(fwd(x, params))
    assert out_f32.shape == (N, 1)
    assert jnp.allclose(out_f32, ref, atol=2e-5, rtol=1e-4)

    # bf16 fc1/fc2 path, x handed in pre-transposed as (3, N) (no wrapper
    # relayout of the batch array): relaxed tolerance.
    out_bf16 = jax.block_until_ready(
        fwd(x.T, params, use_bf16=True, x_in_lanes=True))
    assert out_bf16.shape == (N, 1)
    assert jnp.allclose(out_bf16, ref, atol=1e-1, rtol=1e-1)

    print("KERNEL_OK")
</pallas_src>

<mosaic_0001>
module attributes {stable_mosaic.version = 11 : i64} {
  func.func @_reg3d_kernel(%arg0: i32, %arg1: memref<3x512xf32, #tpu.memory_space<vmem>>, %arg2: memref<64x3xf32, #tpu.memory_space<vmem>>, %arg3: memref<64x1xf32, #tpu.memory_space<vmem>>, %arg4: memref<32x64xf32, #tpu.memory_space<vmem>>, %arg5: memref<32x1xf32, #tpu.memory_space<vmem>>, %arg6: memref<32x1xf32, #tpu.memory_space<vmem>>, %arg7: memref<1x1xf32, #tpu.memory_space<vmem>>, %arg8: memref<1x512xf32, #tpu.memory_space<vmem>>) attributes {dimension_semantics = [#tpu.dimension_semantics<parallel>], iteration_bounds = array<i64: 2>, scalar_prefetch = 0 : i64, scratch_operands = 0 : i64, tpu.core_type = #tpu.core_type<tc>, window_params = [{transform_indices = @transform_0, window_bounds = array<i64: 3, 512>}, {pipeline_mode = #tpu.pipeline_mode<synchronous>, transform_indices = @transform_1, window_bounds = array<i64: 64, 3>}, {pipeline_mode = #tpu.pipeline_mode<synchronous>, transform_indices = @transform_2, window_bounds = array<i64: 64, 1>}, {pipeline_mode = #tpu.pipeline_mode<synchronous>, transform_indices = @transform_3, window_bounds = array<i64: 32, 64>}, {pipeline_mode = #tpu.pipeline_mode<synchronous>, transform_indices = @transform_4, window_bounds = array<i64: 32, 1>}, {pipeline_mode = #tpu.pipeline_mode<synchronous>, transform_indices = @transform_5, window_bounds = array<i64: 32, 1>}, {pipeline_mode = #tpu.pipeline_mode<synchronous>, transform_indices = @transform_6, window_bounds = array<i64: 1, 1>}, {transform_indices = @transform_7, window_bounds = array<i64: 1, 512>}]} {
    %c0 = arith.constant 0 : index
    %c0_0 = arith.constant 0 : index
    %0 = vector.load %arg1[%c0, %c0_0] : memref<3x512xf32, #tpu.memory_space<vmem>>, vector<3x512xf32>
    %c0_1 = arith.constant 0 : index
    %c0_2 = arith.constant 0 : index
    %1 = vector.load %arg2[%c0_1, %c0_2] : memref<64x3xf32, #tpu.memory_space<vmem>>, vector<64x3xf32>
    %2 = vector.extract_strided_slice %1 {offsets = [0, 0], sizes = [64, 1], strides = [1, 1]} : vector<64x3xf32> to vector<64x1xf32>
    %3 = vector.extract_strided_slice %0 {offsets = [0, 0], sizes = [1, 512], strides = [1, 1]} : vector<3x512xf32> to vector<1x512xf32>
    %4 = vector.broadcast %2 : vector<64x1xf32> to vector<64x512xf32>
    %5 = vector.broadcast %3 : vector<1x512xf32> to vector<64x512xf32>
    %6 = arith.mulf %4, %5 : vector<64x512xf32>
    %7 = vector.extract_strided_slice %1 {offsets = [0, 1], sizes = [64, 1], strides = [1, 1]} : vector<64x3xf32> to vector<64x1xf32>
    %8 = vector.extract_strided_slice %0 {offsets = [1, 0], sizes = [1, 512], strides = [1, 1]} : vector<3x512xf32> to vector<1x512xf32>
    %9 = vector.broadcast %7 : vector<64x1xf32> to vector<64x512xf32>
    %10 = vector.broadcast %8 : vector<1x512xf32> to vector<64x512xf32>
    %11 = arith.mulf %9, %10 : vector<64x512xf32>
    %12 = arith.addf %6, %11 : vector<64x512xf32>
    %13 = vector.extract_strided_slice %1 {offsets = [0, 2], sizes = [64, 1], strides = [1, 1]} : vector<64x3xf32> to vector<64x1xf32>
    %14 = vector.extract_strided_slice %0 {offsets = [2, 0], sizes = [1, 512], strides = [1, 1]} : vector<3x512xf32> to vector<1x512xf32>
    %15 = vector.broadcast %13 : vector<64x1xf32> to vector<64x512xf32>
    %16 = vector.broadcast %14 : vector<1x512xf32> to vector<64x512xf32>
    %17 = arith.mulf %15, %16 : vector<64x512xf32>
    %18 = arith.addf %12, %17 : vector<64x512xf32>
    %c0_3 = arith.constant 0 : index
    %c0_4 = arith.constant 0 : index
    %19 = vector.load %arg3[%c0_3, %c0_4] : memref<64x1xf32, #tpu.memory_space<vmem>>, vector<64x1xf32>
    %20 = vector.broadcast %19 : vector<64x1xf32> to vector<64x512xf32>
    %21 = arith.addf %18, %20 : vector<64x512xf32>
    %cst = arith.constant 0.000000e+00 : f32
    %22 = vector.broadcast %cst : f32 to vector<64x512xf32>
    %23 = arith.maximumf %21, %22 : vector<64x512xf32>
    %c0_5 = arith.constant 0 : index
    %c0_6 = arith.constant 0 : index
    %24 = vector.load %arg4[%c0_5, %c0_6] : memref<32x64xf32, #tpu.memory_space<vmem>>, vector<32x64xf32>
    %cst_7 = arith.constant dense<0.000000e+00> : vector<32x512xf32>
    %25 = tpu.matmul %24, %23, %cst_7 {dimension_numbers = #tpu.dot_dimension_numbers<[1], [0], [0], [1], [0, 0, 1, 1], [], []>} : vector<32x64xf32>, vector<64x512xf32>, vector<32x512xf32> -> vector<32x512xf32>
    %c0_8 = arith.constant 0 : index
    %c0_9 = arith.constant 0 : index
    %26 = vector.load %arg5[%c0_8, %c0_9] : memref<32x1xf32, #tpu.memory_space<vmem>>, vector<32x1xf32>
    %27 = vector.broadcast %26 : vector<32x1xf32> to vector<32x512xf32>
    %28 = arith.addf %25, %27 : vector<32x512xf32>
    %cst_10 = arith.constant 0.000000e+00 : f32
    %29 = vector.broadcast %cst_10 : f32 to vector<32x512xf32>
    %30 = arith.maximumf %28, %29 : vector<32x512xf32>
    %c0_11 = arith.constant 0 : index
    %c0_12 = arith.constant 0 : index
    %31 = vector.load %arg6[%c0_11, %c0_12] : memref<32x1xf32, #tpu.memory_space<vmem>>, vector<32x1xf32>
    %32 = vector.broadcast %31 : vector<32x1xf32> to vector<32x512xf32>
    %33 = arith.mulf %32, %30 : vector<32x512xf32>
    %cst_13 = arith.constant dense<0.000000e+00> : vector<512xf32>
    %34 = vector.multi_reduction <add>, %33, %cst_13 [0] : vector<32x512xf32> to vector<512xf32>
    %35 = vector.shape_cast %34 : vector<512xf32> to vector<1x512xf32>
    %c0_14 = arith.constant 0 : index
    %c0_15 = arith.constant 0 : index
    %36 = vector.load %arg7[%c0_14, %c0_15] : memref<1x1xf32, #tpu.memory_space<vmem>>, vector<1x1xf32>
    %37 = vector.broadcast %36 : vector<1x1xf32> to vector<1x512xf32>
    %38 = arith.addf %35, %37 : vector<1x512xf32>
    %c0_16 = arith.constant 0 : index
    %c0_17 = arith.constant 0 : index
    %39 = vector.load %arg8[%c0_16, %c0_17] : memref<1x512xf32, #tpu.memory_space<vmem>>, vector<1x512xf32>
    tpu.vector_store %arg8[%c0_16, %c0_17], %38 {strides = array<i32>} : memref<1x512xf32, #tpu.memory_space<vmem>>, vector<1x512xf32>,
    return
  }
  func.func @transform_0(%arg0: i32) -> (i32, i32) {
    %c0_i32 = arith.constant 0 : i32
    %c0_i32_0 = arith.constant 0 : i32
    return %c0_i32, %arg0 : i32, i32
  }
  func.func @transform_1(%arg0: i32) -> (i32, i32) {
    %c0_i32 = arith.constant 0 : i32
    %c0_i32_0 = arith.constant 0 : i32
    %c0_i32_1 = arith.constant 0 : i32
    return %c0_i32, %c0_i32_0 : i32, i32
  }
  func.func @transform_2(%arg0: i32) -> (i32, i32) {
    %c0_i32 = arith.constant 0 : i32
    %c0_i32_0 = arith.constant 0 : i32
    %c0_i32_1 = arith.constant 0 : i32
    return %c0_i32, %c0_i32_0 : i32, i32
  }
  func.func @transform_3(%arg0: i32) -> (i32, i32) {
    %c0_i32 = arith.constant 0 : i32
    %c0_i32_0 = arith.constant 0 : i32
    %c0_i32_1 = arith.constant 0 : i32
    return %c0_i32, %c0_i32_0 : i32, i32
  }
  func.func @transform_4(%arg0: i32) -> (i32, i32) {
    %c0_i32 = arith.constant 0 : i32
    %c0_i32_0 = arith.constant 0 : i32
    %c0_i32_1 = arith.constant 0 : i32
    return %c0_i32, %c0_i32_0 : i32, i32
  }
  func.func @transform_5(%arg0: i32) -> (i32, i32) {
    %c0_i32 = arith.constant 0 : i32
    %c0_i32_0 = arith.constant 0 : i32
    %c0_i32_1 = arith.constant 0 : i32
    return %c0_i32, %c0_i32_0 : i32, i32
  }
  func.func @transform_6(%arg0: i32) -> (i32, i32) {
    %c0_i32 = arith.constant 0 : i32
    %c0_i32_0 = arith.constant 0 : i32
    %c0_i32_1 = arith.constant 0 : i32
    return %c0_i32, %c0_i32_0 : i32, i32
  }
  func.func @transform_7(%arg0: i32) -> (i32, i32) {
    %c0_i32 = arith.constant 0 : i32
    %c0_i32_0 = arith.constant 0 : i32
    return %c0_i32, %arg0 : i32, i32
  }
}

</mosaic_0001>

<llo_original>
// kernel: reg3d_forward.1
$region0: #{reg3d_forward.1}
  #allocation0 [shape = 'u32[]', space=smem, size = 0x4, offset = 0x4, fixed_abs, tag = 'smem constant byte address 0x4 - core index']
  #allocation1 [shape = 'u32[144,128]{1,0:T(1,128)}', space=vmem, size = 0x12000, scoped, tag = 'internal scratch']
  #allocation2 [shape = 'f32[1,1]{1,0:T(1,128)S(1)}', space=vmem, size = 0x200, scoped, tag = 'scoped memory for reg3d_forward.1']
  %s0 = inlined_call_operand.vmem [shape: f32[3,1024], index: 0, kind: input, shape index: {}]
  %s1 = inlined_call_operand.vmem [shape: f32[64,3], index: 1, kind: input, shape index: {}]
  %s2 = inlined_call_operand.vmem [shape: f32[64,1], index: 2, kind: input, shape index: {}]
  %s3 = inlined_call_operand.vmem [shape: f32[32,64], index: 3, kind: input, shape index: {}]
  %s4 = inlined_call_operand.vmem [shape: f32[32,1], index: 4, kind: input, shape index: {}]
  %s5 = inlined_call_operand.vmem [shape: f32[32,1], index: 5, kind: input, shape index: {}]
  %s6 = inlined_call_operand.<no memory space> [shape: f32[1,1], index: 6, kind: input, shape index: {}]
  %s7 = inlined_call_operand.hbm [shape: f32[1,1024], index: 7, kind: output, shape index: {}]
  %s8 = sld [smem:[#allocation0]]
  $region61: #{reg3d_forward.1} parent=0
    _
  %s10 = ssub.s32 1, %s8
  %s11 = scalar_select 0, %s10, %s8
  %v12 = vstv %s6
  %13 = vst [vmem:[#allocation2] sm:$0x1] %v12
  $region1: #{reg3d_forward.1} parent=0
    #allocation3 [shape = 'u8[4096]{0}', space=vmem, size = 0x1000, scoped, tag = 'output window, operand 0']
    #allocation4 [shape = 's32[2]{0}', space=sflag, size = 0x8, scoped, tag = 'scoped memory for reg3d_forward.1']
    %14 = vsyncpa [#allocation4], 0
    %s15 = scalar_lea.sflag [#allocation4], 1
    %16 = vsyncpa %s15, 0
    loop: start=0, step=1, limit=4
    $region2: #{reg3d_forward.1} parent=1 // loop_pre_header
      _
    $region3: #{reg3d_forward.1} parent=1 // loop_header
      %s18 = sphi 0, %s22
      %p19 = scmp.ge.s32.totalorder %s18, 4
      %s28 = sphi 0, %s30
      %s31 = sphi 0, %s28
      %s32 = sphi 0, %s31
      %s48 = sphi 0, %s32
      %s52 = sphi 0, %s52
      %s54 = sphi 0, %s52
      %s55 = sphi 0, %s54
      %s69 = sphi 0, %s55
      %s73 = sphi 0, %s73
      %s75 = sphi 0, %s73
      %s76 = sphi 0, %s75
      %s90 = sphi 0, %s76
      %s94 = sphi 0, %s94
      %s96 = sphi 0, %s94
      %s97 = sphi 0, %s96
      %s111 = sphi 0, %s97
      %s115 = sphi 0, %s115
      %s117 = sphi 0, %s115
      %s118 = sphi 0, %s117
      %s132 = sphi 0, %s118
      %s136 = sphi 0, %s136
      %s138 = sphi 0, %s136
      %s139 = sphi 0, %s138
      %s153 = sphi 0, %s139
      %s157 = sphi 0, %s157
      %s159 = sphi 0, %s157
      %s160 = sphi 0, %s159
      %s174 = sphi 0, %s160
      %s180 = sphi 0, %s182
      %s183 = sphi 0, %s180
      %s184 = sphi 0, %s183
      %s200 = sphi 0, %s184
    $region4: #{reg3d_forward.1} parent=1 // loop_header_branch
      %21 = sbr.rel (%p19) target = $region8
    $region5: #{reg3d_forward.1} parent=1 // loop_body
      %s23 = ssub.s32 %s18, 1
      %s24 = ssub.s32 %s18, 2
      %s25 = sadd.s32 %s18, 1
      %s26 = ssub.s32 %s18, %s25
      %p27 = scmp.eq.s32.totalorder %s26, 0
      %s29 = sadd.s32 %s28, 1
      %s30 = scalar_select %p27, %s28, %s29
      %p33 = pneg %p27
      %p34 = scmp.eq.s32.totalorder %s18, 1
      %p35 = por %p33, %p34
      %p36 = scmp.ne.s32.totalorder %s28, %s31
      %p37 = scmp.eq.s32.totalorder %s18, 0
      %p38 = por %p36, %p37
      %p39 = scmp.ne.s32.totalorder %s28, %s31
      %p40 = scmp.eq.s32.totalorder %s23, 1
      %p41 = por %p39, %p40
      %p42 = scmp.ne.s32.totalorder %s31, %s32
      %p43 = scmp.eq.s32.totalorder %s23, 0
      %p44 = por %p42, %p43
      %p45 = scmp.ne.s32.totalorder %s31, %s32
      %p46 = scmp.eq.s32.totalorder %s24, 1
      %p47 = por %p45, %p46
      %p49 = scmp.ne.s32.totalorder %s32, %s48
      %p50 = scmp.eq.s32.totalorder %s24, 0
      %p51 = por %p49, %p50
      %s53 = sadd.s32 %s52, 1
      %p56 = scmp.eq.s32.totalorder %s18, 1
      %p57 = scmp.ne.s32.totalorder %s52, %s54
      %p58 = scmp.eq.s32.totalorder %s18, 0
      %p59 = por %p57, %p58
      %p60 = scmp.ne.s32.totalorder %s52, %s54
      %p61 = scmp.eq.s32.totalorder %s23, 1
      %p62 = por %p60, %p61
      %p63 = scmp.ne.s32.totalorder %s54, %s55
      %p64 = scmp.eq.s32.totalorder %s23, 0
      %p65 = por %p63, %p64
      %p66 = scmp.ne.s32.totalorder %s54, %s55
      %p67 = scmp.eq.s32.totalorder %s24, 1
      %p68 = por %p66, %p67
      %p70 = scmp.ne.s32.totalorder %s55, %s69
      %p71 = scmp.eq.s32.totalorder %s24, 0
      %p72 = por %p70, %p71
      %s74 = sadd.s32 %s73, 1
      %p77 = scmp.eq.s32.totalorder %s18, 1
      %p78 = scmp.ne.s32.totalorder %s73, %s75
      %p79 = scmp.eq.s32.totalorder %s18, 0
      %p80 = por %p78, %p79
      %p81 = scmp.ne.s32.totalorder %s73, %s75
      %p82 = scmp.eq.s32.totalorder %s23, 1
      %p83 = por %p81, %p82
      %p84 = scmp.ne.s32.totalorder %s75, %s76
      %p85 = scmp.eq.s32.totalorder %s23, 0
      %p86 = por %p84, %p85
      %p87 = scmp.ne.s32.totalorder %s75, %s76
      %p88 = scmp.eq.s32.totalorder %s24, 1
      %p89 = por %p87, %p88
      %p91 = scmp.ne.s32.totalorder %s76, %s90
      %p92 = scmp.eq.s32.totalorder %s24, 0
      %p93 = por %p91, %p92
      %s95 = sadd.s32 %s94, 1
      %p98 = scmp.eq.s32.totalorder %s18, 1
      %p99 = scmp.ne.s32.totalorder %s94, %s96
      %p100 = scmp.eq.s32.totalorder %s18, 0
      %p101 = por %p99, %p100
      %p102 = scmp.ne.s32.totalorder %s94, %s96
      %p103 = scmp.eq.s32.totalorder %s23, 1
      %p104 = por %p102, %p103
      %p105 = scmp.ne.s32.totalorder %s96, %s97
      %p106 = scmp.eq.s32.totalorder %s23, 0
      %p107 = por %p105, %p106
      %p108 = scmp.ne.s32.totalorder %s96, %s97
      %p109 = scmp.eq.s32.totalorder %s24, 1
      %p110 = por %p108, %p109
      %p112 = scmp.ne.s32.totalorder %s97, %s111
      %p113 = scmp.eq.s32.totalorder %s24, 0
      %p114 = por %p112, %p113
      %s116 = sadd.s32 %s115, 1
      %p119 = scmp.eq.s32.totalorder %s18, 1
      %p120 = scmp.ne.s32.totalorder %s115, %s117
      %p121 = scmp.eq.s32.totalorder %s18, 0
      %p122 = por %p120, %p121
      %p123 = scmp.ne.s32.totalorder %s115, %s117
      %p124 = scmp.eq.s32.totalorder %s23, 1
      %p125 = por %p123, %p124
      %p126 = scmp.ne.s32.totalorder %s117, %s118
      %p127 = scmp.eq.s32.totalorder %s23, 0
      %p128 = por %p126, %p127
      %p129 = scmp.ne.s32.totalorder %s117, %s118
      %p130 = scmp.eq.s32.totalorder %s24, 1
      %p131 = por %p129, %p130
      %p133 = scmp.ne.s32.totalorder %s118, %s132
      %p134 = scmp.eq.s32.totalorder %s24, 0
      %p135 = por %p133, %p134
      %s137 = sadd.s32 %s136, 1
      %p140 = scmp.eq.s32.totalorder %s18, 1
      %p141 = scmp.ne.s32.totalorder %s136, %s138
      %p142 = scmp.eq.s32.totalorder %s18, 0
      %p143 = por %p141, %p142
      %p144 = scmp.ne.s32.totalorder %s136, %s138
      %p145 = scmp.eq.s32.totalorder %s23, 1
      %p146 = por %p144, %p145
      %p147 = scmp.ne.s32.totalorder %s138, %s139
      %p148 = scmp.eq.s32.totalorder %s23, 0
      %p149 = por %p147, %p148
      %p150 = scmp.ne.s32.totalorder %s138, %s139
      %p151 = scmp.eq.s32.totalorder %s24, 1
      %p152 = por %p150, %p151
      %p154 = scmp.ne.s32.totalorder %s139, %s153
      %p155 = scmp.eq.s32.totalorder %s24, 0
      %p156 = por %p154, %p155
      %s158 = sadd.s32 %s157, 1
      %p161 = scmp.eq.s32.totalorder %s18, 1
      %p162 = scmp.ne.s32.totalorder %s157, %s159
      %p163 = scmp.eq.s32.totalorder %s18, 0
      %p164 = por %p162, %p163
      %p165 = scmp.ne.s32.totalorder %s157, %s159
      %p166 = scmp.eq.s32.totalorder %s23, 1
      %p167 = por %p165, %p166
      %p168 = scmp.ne.s32.totalorder %s159, %s160
      %p169 = scmp.eq.s32.totalorder %s23, 0
      %p170 = por %p168, %p169
      %p171 = scmp.ne.s32.totalorder %s159, %s160
      %p172 = scmp.eq.s32.totalorder %s24, 1
      %p173 = por %p171, %p172
      %p175 = scmp.ne.s32.totalorder %s160, %s174
      %p176 = scmp.eq.s32.totalorder %s24, 0
      %p177 = por %p175, %p176
      %s178 = ssub.s32 %s18, %s25
      %p179 = scmp.eq.s32.totalorder %s178, 0
      %s181 = sadd.s32 %s180, 1
      %s182 = scalar_select %p179, %s180, %s181
      %p185 = pneg %p179
      %p186 = scmp.eq.s32.totalorder %s18, 1
      %p187 = por %p185, %p186
      %p188 = scmp.ne.s32.totalorder %s180, %s183
      %p189 = scmp.eq.s32.totalorder %s18, 0
      %p190 = por %p188, %p189
      %p191 = scmp.ne.s32.totalorder %s180, %s183
      %p192 = scmp.eq.s32.totalorder %s23, 1
      %p193 = por %p191, %p192
      %p194 = scmp.ne.s32.totalorder %s183, %s184
      %p195 = scmp.eq.s32.totalorder %s23, 0
      %p196 = por %p194, %p195
      %p197 = scmp.ne.s32.totalorder %s183, %s184
      %p198 = scmp.eq.s32.totalorder %s24, 1
      %p199 = por %p197, %p198
      %p201 = scmp.ne.s32.totalorder %s184, %s200
      %p202 = scmp.eq.s32.totalorder %s24, 0
      %p203 = por %p201, %p202
      %p204 = scmp.le.s32.totalorder 1, %s18
      %p205 = scmp.lt.s32.totalorder %s18, 3
      %p206 = pnand %p204, %p205
      %p207 = pneg %p206
      // Predicated region
      $region9: #{reg3d_forward.1} parent=5 // pred_check
        _
      $region10: #{reg3d_forward.1} parent=5 // pred_check_branch
        %209 = sbr.rel (%p206) target = $region12
      $region11: #{reg3d_forward.1} parent=5 // pred_region
        %s210 = ssub.s32 %s18, 1
        // Predicated region
        $region13: #{reg3d_forward.1} parent=11 // pred_check
          %p211 = pneg %p65
        $region14: #{reg3d_forward.1} parent=11 // pred_check_branch
          %213 = sbr.rel (%p211) target = $region16
        $region15: #{reg3d_forward.1} parent=11 // pred_region
          _
        $region16: #{reg3d_forward.1} parent=11 // pred_fallthru
          _
        // Predicated region
        $region17: #{reg3d_forward.1} parent=11 // pred_check
          %p214 = pneg %p86
        $region18: #{reg3d_forward.1} parent=11 // pred_check_branch
          %216 = sbr.rel (%p214) target = $region20
        $region19: #{reg3d_forward.1} parent=11 // pred_region
          _
        $region20: #{reg3d_forward.1} parent=11 // pred_fallthru
          _
        // Predicated region
        $region21: #{reg3d_forward.1} parent=11 // pred_check
          %p217 = pneg %p107
        $region22: #{reg3d_forward.1} parent=11 // pred_check_branch
          %219 = sbr.rel (%p217) target = $region24
        $region23: #{reg3d_forward.1} parent=11 // pred_region
          _
        $region24: #{reg3d_forward.1} parent=11 // pred_fallthru
          _
        // Predicated region
        $region25: #{reg3d_forward.1} parent=11 // pred_check
          %p220 = pneg %p128
        $region26: #{reg3d_forward.1} parent=11 // pred_check_branch
          %222 = sbr.rel (%p220) target = $region28
        $region27: #{reg3d_forward.1} parent=11 // pred_region
          _
        $region28: #{reg3d_forward.1} parent=11 // pred_fallthru
          _
        // Predicated region
        $region29: #{reg3d_forward.1} parent=11 // pred_check
          %p223 = pneg %p149
        $region30: #{reg3d_forward.1} parent=11 // pred_check_branch
          %225 = sbr.rel (%p223) target = $region32
        $region31: #{reg3d_forward.1} parent=11 // pred_region
          _
        $region32: #{reg3d_forward.1} parent=11 // pred_fallthru
          _
        // Predicated region
        $region33: #{reg3d_forward.1} parent=11 // pred_check
          %p226 = pneg %p170
        $region34: #{reg3d_forward.1} parent=11 // pred_check_branch
          %228 = sbr.rel (%p226) target = $region36
        $region35: #{reg3d_forward.1} parent=11 // pred_region
          _
        $region36: #{reg3d_forward.1} parent=11 // pred_fallthru
          _
      $region12: #{reg3d_forward.1} parent=5 // pred_fallthru
        _
      %p229 = scmp.lt.s32.totalorder %s18, 2
      // Predicated region
      $region37: #{reg3d_forward.1} parent=5 // pred_check
        %p230 = pneg %p229
      $region38: #{reg3d_forward.1} parent=5 // pred_check_branch
        %232 = sbr.rel (%p230) target = $region40
      $region39: #{reg3d_forward.1} parent=5 // pred_region
        // Predicated region
        $region41: #{reg3d_forward.1} parent=39 // pred_check
          %p233 = pneg %p38
        $region42: #{reg3d_forward.1} parent=39 // pred_check_branch
          %235 = sbr.rel (%p233) target = $region44
        $region43: #{reg3d_forward.1} parent=39 // pred_region
          %s236 = smul.u32 4, %s18
          %p237 = scmp.lt.s32.totalorder %s236, 7
          %s238 = scalar_select %p237, %s236, 7
          %s239 = smul.addr %s238, 4
          %s240 = scalar_lea.vmem %s0, %s239
          %s241 = smul.u32 4, %s18
        $region44: #{reg3d_forward.1} parent=39 // pred_fallthru
          _
      $region40: #{reg3d_forward.1} parent=5 // pred_fallthru
        _
      %p242 = scmp.le.s32.totalorder 1, %s18
      %p243 = scmp.lt.s32.totalorder %s18, 3
      %p244 = pnand %p242, %p243
      %p245 = pneg %p244
      // Predicated region
      $region45: #{reg3d_forward.1} parent=5 // pred_check
        _
      $region46: #{reg3d_forward.1} parent=5 // pred_check_branch
        %247 = sbr.rel (%p244) target = $region48
      $region47: #{reg3d_forward.1} parent=5 // pred_region
        %s248 = ssub.s32 %s18, 1
        %s249 = smul.u32 4, %s23
        %p250 = scmp.lt.s32.totalorder %s249, 7
        %s251 = scalar_select %p250, %s249, 7
        %s252 = smul.addr %s251, 4
        %s253 = scalar_lea.vmem %s0, %s252
        %p254 = pneg %p44
        %p255 = pneg %p41
        %p256 = pneg %p65
        %p257 = pneg %p62
        %p258 = pneg %p86
        %p259 = pneg %p83
        %p260 = pneg %p107
        %p261 = pneg %p104
        %p262 = pneg %p128
        %p263 = pneg %p125
        %p264 = pneg %p149
        %p265 = pneg %p146
        %p266 = pneg %p170
        %p267 = pneg %p167
        %p268 = pneg %p196
        %p269 = pneg %p193
        %s270 = sand.u32 %s183, 1
        %s271 = scalar_lea.sflag [#allocation4], %s270
        %s272 = sand.u32 %s183, 1
        %s273 = smul.addr %s272, 4
        %s274 = scalar_lea.vmem [#allocation3], %s273
        %s275 = smul.u32 4, %s23
        %p276 = scmp.lt.s32.totalorder %s275, 7
        %s277 = scalar_select %p276, %s275, 7
        %s278 = smul.addr %s277, 4
        %s279 = scalar_lea.vmem %s0, %s278
        %s280 = smul.u32 4, %s23
        %s281 = smul.u32 4, %s23
        %v282 = vld [vmem:[%s279] sm:$0x77]
        %v283 = vld [vmem:[%s279 + $0x8] sm:$0x77]
        %v284 = vld [vmem:[%s1] sm:$0xff]
        %v285 = vld [vmem:[%s1 + $0x8] sm:$0xff]
        %v286 = vld [vmem:[%s1 + $0x10] sm:$0xff]
        %v287 = vld [vmem:[%s1 + $0x18] sm:$0xff]
        %v288 = vld [vmem:[%s1 + $0x20] sm:$0xff]
        %v289 = vld [vmem:[%s1 + $0x28] sm:$0xff]
        %v290 = vld [vmem:[%s1 + $0x30] sm:$0xff]
        %v291 = vld [vmem:[%s1 + $0x38] sm:$0xff]
        %293 = vset.pattern.permute.xlu0 0
        %294 = vperm.xlu0 %293, %v284
        %v295 = vpop.permute.xlu0 %294
        %298 = vset.pattern.permute.xlu0 0
        %299 = vperm.xlu0 %298, %v285
        %v300 = vpop.permute.xlu0 %299
        %303 = vset.pattern.permute.xlu0 0
        %304 = vperm.xlu0 %303, %v286
        %v305 = vpop.permute.xlu0 %304
        %308 = vset.pattern.permute.xlu0 0
        %309 = vperm.xlu0 %308, %v287
        %v310 = vpop.permute.xlu0 %309
        %313 = vset.pattern.permute.xlu0 0
        %314 = vperm.xlu0 %313, %v288
        %v315 = vpop.permute.xlu0 %314
        %318 = vset.pattern.permute.xlu0 0
        %319 = vperm.xlu0 %318, %v289
        %v320 = vpop.permute.xlu0 %319
        %323 = vset.pattern.permute.xlu0 0
        %324 = vperm.xlu0 %323, %v290
        %v325 = vpop.permute.xlu0 %324
        %328 = vset.pattern.permute.xlu0 0
        %329 = vperm.xlu0 %328, %v291
        %v330 = vpop.permute.xlu0 %329
        %v334 = vlaneseq
        %v335 = vshrl.u32 %v334, 7
        %v336 = vsub.s32 0, %v335
        %v337 = vrot.slane %v282, %v336
        %v338 = vlaneseq
        %v339 = vshrl.u32 %v338, 7
        %v340 = vsub.s32 4, %v339
        %v341 = vrot.slane %v282, %v340
        %v342 = vlaneseq
        %v343 = vshrl.u32 %v342, 7
        %v344 = vsub.s32 0, %v343
        %v345 = vrot.slane %v283, %v344
        %v346 = vlaneseq
        %v347 = vshrl.u32 %v346, 7
        %v348 = vsub.s32 4, %v347
        %v349 = vrot.slane %v283, %v348
        %v354 = vlaneseq
        %v355 = vshrl.u32 %v354, 7
        %v356 = vsub.s32 0, %v355
        %v357 = vrot.slane %v337, %v356
        %v358 = vlaneseq
        %v359 = vshrl.u32 %v358, 7
        %v360 = vsub.s32 0, %v359
        %v361 = vrot.slane %v341, %v360
        %v362 = vlaneseq
        %v363 = vshrl.u32 %v362, 7
        %v364 = vsub.s32 0, %v363
        %v365 = vrot.slane %v345, %v364
        %v366 = vlaneseq
        %v367 = vshrl.u32 %v366, 7
        %v368 = vsub.s32 0, %v367
        %v369 = vrot.slane %v349, %v368
        %v370 = vmul.f32 %v295, %v357
        %v371 = vmul.f32 %v295, %v361
        %v372 = vmul.f32 %v295, %v365
        %v373 = vmul.f32 %v295, %v369
        %v374 = vmul.f32 %v300, %v357
        %v375 = vmul.f32 %v300, %v361
        %v376 = vmul.f32 %v300, %v365
        %v377 = vmul.f32 %v300, %v369
        %v378 = vmul.f32 %v305, %v357
        %v379 = vmul.f32 %v305, %v361
        %v380 = vmul.f32 %v305, %v365
        %v381 = vmul.f32 %v305, %v369
        %v382 = vmul.f32 %v310, %v357
        %v383 = vmul.f32 %v310, %v361
        %v384 = vmul.f32 %v310, %v365
        %v385 = vmul.f32 %v310, %v369
        %v386 = vmul.f32 %v315, %v357
        %v387 = vmul.f32 %v315, %v361
        %v388 = vmul.f32 %v315, %v365
        %v389 = vmul.f32 %v315, %v369
        %v390 = vmul.f32 %v320, %v357
        %v391 = vmul.f32 %v320, %v361
        %v392 = vmul.f32 %v320, %v365
        %v393 = vmul.f32 %v320, %v369
        %v394 = vmul.f32 %v325, %v357
        %v395 = vmul.f32 %v325, %v361
        %v396 = vmul.f32 %v325, %v365
        %v397 = vmul.f32 %v325, %v369
        %v398 = vmul.f32 %v330, %v357
        %v399 = vmul.f32 %v330, %v361
        %v400 = vmul.f32 %v330, %v365
        %v401 = vmul.f32 %v330, %v369
        %402 = vset.pattern.permute.xlu0 1
        %403 = vperm.xlu0 %402, %v284
        %v404 = vpop.permute.xlu0 %403
        %406 = vset.pattern.permute.xlu0 1
        %407 = vperm.xlu0 %406, %v285
        %v408 = vpop.permute.xlu0 %407
        %410 = vset.pattern.permute.xlu0 1
        %411 = vperm.xlu0 %410, %v286
        %v412 = vpop.permute.xlu0 %411
        %414 = vset.pattern.permute.xlu0 1
        %415 = vperm.xlu0 %414, %v287
        %v416 = vpop.permute.xlu0 %415
        %418 = vset.pattern.permute.xlu0 1
        %419 = vperm.xlu0 %418, %v288
        %v420 = vpop.permute.xlu0 %419
        %422 = vset.pattern.permute.xlu0 1
        %423 = vperm.xlu0 %422, %v289
        %v424 = vpop.permute.xlu0 %423
        %426 = vset.pattern.permute.xlu0 1
        %427 = vperm.xlu0 %426, %v290
        %v428 = vpop.permute.xlu0 %427
        %430 = vset.pattern.permute.xlu0 1
        %431 = vperm.xlu0 %430, %v291
        %v432 = vpop.permute.xlu0 %431
        %v434 = vlaneseq
        %v435 = vshrl.u32 %v434, 7
        %v436 = vsub.s32 1, %v435
        %v437 = vrot.slane %v282, %v436
        %v438 = vlaneseq
        %v439 = vshrl.u32 %v438, 7
        %v440 = vsub.s32 5, %v439
        %v441 = vrot.slane %v282, %v440
        %v442 = vlaneseq
        %v443 = vshrl.u32 %v442, 7
        %v444 = vsub.s32 1, %v443
        %v445 = vrot.slane %v283, %v444
        %v446 = vlaneseq
        %v447 = vshrl.u32 %v446, 7
        %v448 = vsub.s32 5, %v447
        %v449 = vrot.slane %v283, %v448
        %v454 = vlaneseq
        %v455 = vshrl.u32 %v454, 7
        %v456 = vsub.s32 1, %v455
        %v457 = vrot.slane %v437, %v456
        %v458 = vlaneseq
        %v459 = vshrl.u32 %v458, 7
        %v460 = vsub.s32 1, %v459
        %v461 = vrot.slane %v441, %v460
        %v462 = vlaneseq
        %v463 = vshrl.u32 %v462, 7
        %v464 = vsub.s32 1, %v463
        %v465 = vrot.slane %v445, %v464
        %v466 = vlaneseq
        %v467 = vshrl.u32 %v466, 7
        %v468 = vsub.s32 1, %v467
        %v469 = vrot.slane %v449, %v468
        %v470 = vmul.f32 %v404, %v457
        %v471 = vmul.f32 %v404, %v461
        %v472 = vmul.f32 %v404, %v465
        %v473 = vmul.f32 %v404, %v469
        %v474 = vmul.f32 %v408, %v457
        %v475 = vmul.f32 %v408, %v461
        %v476 = vmul.f32 %v408, %v465
        %v477 = vmul.f32 %v408, %v469
        %v478 = vmul.f32 %v412, %v457
        %v479 = vmul.f32 %v412, %v461
        %v480 = vmul.f32 %v412, %v465
        %v481 = vmul.f32 %v412, %v469
        %v482 = vmul.f32 %v416, %v457
        %v483 = vmul.f32 %v416, %v461
        %v484 = vmul.f32 %v416, %v465
        %v485 = vmul.f32 %v416, %v469
        %v486 = vmul.f32 %v420, %v457
        %v487 = vmul.f32 %v420, %v461
        %v488 = vmul.f32 %v420, %v465
        %v489 = vmul.f32 %v420, %v469
        %v490 = vmul.f32 %v424, %v457
        %v491 = vmul.f32 %v424, %v461
        %v492 = vmul.f32 %v424, %v465
        %v493 = vmul.f32 %v424, %v469
        %v494 = vmul.f32 %v428, %v457
        %v495 = vmul.f32 %v428, %v461
        %v496 = vmul.f32 %v428, %v465
        %v497 = vmul.f32 %v428, %v469
        %v498 = vmul.f32 %v432, %v457
        %v499 = vmul.f32 %v432, %v461
        %v500 = vmul.f32 %v432, %v465
        %v501 = vmul.f32 %v432, %v469
        %v502 = vadd.f32 %v370, %v470
        %v503 = vadd.f32 %v371, %v471
        %v504 = vadd.f32 %v372, %v472
        %v505 = vadd.f32 %v373, %v473
        %v506 = vadd.f32 %v374, %v474
        %v507 = vadd.f32 %v375, %v475
        %v508 = vadd.f32 %v376, %v476
        %v509 = vadd.f32 %v377, %v477
        %v510 = vadd.f32 %v378, %v478
        %v511 = vadd.f32 %v379, %v479
        %v512 = vadd.f32 %v380, %v480
        %v513 = vadd.f32 %v381, %v481
        %v514 = vadd.f32 %v382, %v482
        %v515 = vadd.f32 %v383, %v483
        %v516 = vadd.f32 %v384, %v484
        %v517 = vadd.f32 %v385, %v485
        %v518 = vadd.f32 %v386, %v486
        %v519 = vadd.f32 %v387, %v487
        %v520 = vadd.f32 %v388, %v488
        %v521 = vadd.f32 %v389, %v489
        %v522 = vadd.f32 %v390, %v490
        %v523 = vadd.f32 %v391, %v491
        %v524 = vadd.f32 %v392, %v492
        %v525 = vadd.f32 %v393, %v493
        %v526 = vadd.f32 %v394, %v494
        %v527 = vadd.f32 %v395, %v495
        %v528 = vadd.f32 %v396, %v496
        %v529 = vadd.f32 %v397, %v497
        %v530 = vadd.f32 %v398, %v498
        %v531 = vadd.f32 %v399, %v499
        %v532 = vadd.f32 %v400, %v500
        %v533 = vadd.f32 %v401, %v501
        %534 = vset.pattern.permute.xlu0 2
        %535 = vperm.xlu0 %534, %v284
        %v536 = vpop.permute.xlu0 %535
        %538 = vset.pattern.permute.xlu0 2
        %539 = vperm.xlu0 %538, %v285
        %v540 = vpop.permute.xlu0 %539
        %542 = vset.pattern.permute.xlu0 2
        %543 = vperm.xlu0 %542, %v286
        %v544 = vpop.permute.xlu0 %543
        %546 = vset.pattern.permute.xlu0 2
        %547 = vperm.xlu0 %546, %v287
        %v548 = vpop.permute.xlu0 %547
        %550 = vset.pattern.permute.xlu0 2
        %551 = vperm.xlu0 %550, %v288
        %v552 = vpop.permute.xlu0 %551
        %554 = vset.pattern.permute.xlu0 2
        %555 = vperm.xlu0 %554, %v289
        %v556 = vpop.permute.xlu0 %555
        %558 = vset.pattern.permute.xlu0 2
        %559 = vperm.xlu0 %558, %v290
        %v560 = vpop.permute.xlu0 %559
        %562 = vset.pattern.permute.xlu0 2
        %563 = vperm.xlu0 %562, %v291
        %v564 = vpop.permute.xlu0 %563
        %v566 = vlaneseq
        %v567 = vshrl.u32 %v566, 7
        %v568 = vsub.s32 2, %v567
        %v569 = vrot.slane %v282, %v568
        %v570 = vlaneseq
        %v571 = vshrl.u32 %v570, 7
        %v572 = vsub.s32 6, %v571
        %v573 = vrot.slane %v282, %v572
        %v574 = vlaneseq
        %v575 = vshrl.u32 %v574, 7
        %v576 = vsub.s32 2, %v575
        %v577 = vrot.slane %v283, %v576
        %v578 = vlaneseq
        %v579 = vshrl.u32 %v578, 7
        %v580 = vsub.s32 6, %v579
        %v581 = vrot.slane %v283, %v580
        %v586 = vlaneseq
        %v587 = vshrl.u32 %v586, 7
        %v588 = vsub.s32 2, %v587
        %v589 = vrot.slane %v569, %v588
        %v590 = vlaneseq
        %v591 = vshrl.u32 %v590, 7
        %v592 = vsub.s32 2, %v591
        %v593 = vrot.slane %v573, %v592
        %v594 = vlaneseq
        %v595 = vshrl.u32 %v594, 7
        %v596 = vsub.s32 2, %v595
        %v597 = vrot.slane %v577, %v596
        %v598 = vlaneseq
        %v599 = vshrl.u32 %v598, 7
        %v600 = vsub.s32 2, %v599
        %v601 = vrot.slane %v581, %v600
        %v602 = vmul.f32 %v536, %v589
        %v603 = vmul.f32 %v536, %v593
        %v604 = vmul.f32 %v536, %v597
        %v605 = vmul.f32 %v536, %v601
        %v606 = vmul.f32 %v540, %v589
        %v607 = vmul.f32 %v540, %v593
        %v608 = vmul.f32 %v540, %v597
        %v609 = vmul.f32 %v540, %v601
        %v610 = vmul.f32 %v544, %v589
        %v611 = vmul.f32 %v544, %v593
        %v612 = vmul.f32 %v544, %v597
        %v613 = vmul.f32 %v544, %v601
        %v614 = vmul.f32 %v548, %v589
        %v615 = vmul.f32 %v548, %v593
        %v616 = vmul.f32 %v548, %v597
        %v617 = vmul.f32 %v548, %v601
        %v618 = vmul.f32 %v552, %v589
        %v619 = vmul.f32 %v552, %v593
        %v620 = vmul.f32 %v552, %v597
        %v621 = vmul.f32 %v552, %v601
        %v622 = vmul.f32 %v556, %v589
        %v623 = vmul.f32 %v556, %v593
        %v624 = vmul.f32 %v556, %v597
        %v625 = vmul.f32 %v556, %v601
        %v626 = vmul.f32 %v560, %v589
        %v627 = vmul.f32 %v560, %v593
        %v628 = vmul.f32 %v560, %v597
        %v629 = vmul.f32 %v560, %v601
        %v630 = vmul.f32 %v564, %v589
        %v631 = vmul.f32 %v564, %v593
        %v632 = vmul.f32 %v564, %v597
        %v633 = vmul.f32 %v564, %v601
        %v634 = vadd.f32 %v502, %v602
        %v635 = vadd.f32 %v503, %v603
        %v636 = vadd.f32 %v504, %v604
        %v637 = vadd.f32 %v505, %v605
        %v638 = vadd.f32 %v506, %v606
        %v639 = vadd.f32 %v507, %v607
        %v640 = vadd.f32 %v508, %v608
        %v641 = vadd.f32 %v509, %v609
        %v642 = vadd.f32 %v510, %v610
        %v643 = vadd.f32 %v511, %v611
        %v644 = vadd.f32 %v512, %v612
        %v645 = vadd.f32 %v513, %v613
        %v646 = vadd.f32 %v514, %v614
        %v647 = vadd.f32 %v515, %v615
        %v648 = vadd.f32 %v516, %v616
        %v649 = vadd.f32 %v517, %v617
        %v650 = vadd.f32 %v518, %v618
        %v651 = vadd.f32 %v519, %v619
        %v652 = vadd.f32 %v520, %v620
        %v653 = vadd.f32 %v521, %v621
        %v654 = vadd.f32 %v522, %v622
        %v655 = vadd.f32 %v523, %v623
        %v656 = vadd.f32 %v524, %v624
        %v657 = vadd.f32 %v525, %v625
        %v658 = vadd.f32 %v526, %v626
        %v659 = vadd.f32 %v527, %v627
        %v660 = vadd.f32 %v528, %v628
        %v661 = vadd.f32 %v529, %v629
        %v662 = vadd.f32 %v530, %v630
        %v663 = vadd.f32 %v531, %v631
        %v664 = vadd.f32 %v532, %v632
        %v665 = vadd.f32 %v533, %v633
        %v666 = vld [vmem:[%s2] sm:$0xff]
        %v667 = vld [vmem:[%s2 + $0x8] sm:$0xff]
        %v668 = vld [vmem:[%s2 + $0x10] sm:$0xff]
        %v669 = vld [vmem:[%s2 + $0x18] sm:$0xff]
        %v670 = vld [vmem:[%s2 + $0x20] sm:$0xff]
        %v671 = vld [vmem:[%s2 + $0x28] sm:$0xff]
        %v672 = vld [vmem:[%s2 + $0x30] sm:$0xff]
        %v673 = vld [vmem:[%s2 + $0x38] sm:$0xff]
        %675 = vset.pattern.permute.xlu0 0
        %676 = vperm.xlu0 %675, %v666
        %v677 = vpop.permute.xlu0 %676
        %680 = vset.pattern.permute.xlu0 0
        %681 = vperm.xlu0 %680, %v667
        %v682 = vpop.permute.xlu0 %681
        %685 = vset.pattern.permute.xlu0 0
        %686 = vperm.xlu0 %685, %v668
        %v687 = vpop.permute.xlu0 %686
        %690 = vset.pattern.permute.xlu0 0
        %691 = vperm.xlu0 %690, %v669
        %v692 = vpop.permute.xlu0 %691
        %695 = vset.pattern.permute.xlu0 0
        %696 = vperm.xlu0 %695, %v670
        %v697 = vpop.permute.xlu0 %696
        %700 = vset.pattern.permute.xlu0 0
        %701 = vperm.xlu0 %700, %v671
        %v702 = vpop.permute.xlu0 %701
        %705 = vset.pattern.permute.xlu0 0
        %706 = vperm.xlu0 %705, %v672
        %v707 = vpop.permute.xlu0 %706
        %710 = vset.pattern.permute.xlu0 0
        %711 = vperm.xlu0 %710, %v673
        %v712 = vpop.permute.xlu0 %711
        %v714 = vadd.f32 %v634, %v677
        %v715 = vadd.f32 %v635, %v677
        %v716 = vadd.f32 %v636, %v677
        %v717 = vadd.f32 %v637, %v677
        %v718 = vadd.f32 %v638, %v682
        %v719 = vadd.f32 %v639, %v682
        %v720 = vadd.f32 %v640, %v682
        %v721 = vadd.f32 %v641, %v682
        %v722 = vadd.f32 %v642, %v687
        %v723 = vadd.f32 %v643, %v687
        %v724 = vadd.f32 %v644, %v687
        %v725 = vadd.f32 %v645, %v687
        %v726 = vadd.f32 %v646, %v692
        %v727 = vadd.f32 %v647, %v692
        %v728 = vadd.f32 %v648, %v692
        %v729 = vadd.f32 %v649, %v692
        %v730 = vadd.f32 %v650, %v697
        %v731 = vadd.f32 %v651, %v697
        %v732 = vadd.f32 %v652, %v697
        %v733 = vadd.f32 %v653, %v697
        %v734 = vadd.f32 %v654, %v702
        %v735 = vadd.f32 %v655, %v702
        %v736 = vadd.f32 %v656, %v702
        %v737 = vadd.f32 %v657, %v702
        %v738 = vadd.f32 %v658, %v707
        %v739 = vadd.f32 %v659, %v707
        %v740 = vadd.f32 %v660, %v707
        %v741 = vadd.f32 %v661, %v707
        %v742 = vadd.f32 %v662, %v712
        %v743 = vadd.f32 %v663, %v712
        %v744 = vadd.f32 %v664, %v712
        %v745 = vadd.f32 %v665, %v712
        %v746 = vmax.f32 %v714, 0.0
        %v747 = vmax.f32 %v715, 0.0
        %v748 = vmax.f32 %v716, 0.0
        %v749 = vmax.f32 %v717, 0.0
        %v750 = vmax.f32 %v718, 0.0
        %v751 = vmax.f32 %v719, 0.0
        %v752 = vmax.f32 %v720, 0.0
        %v753 = vmax.f32 %v721, 0.0
        %v754 = vmax.f32 %v722, 0.0
        %v755 = vmax.f32 %v723, 0.0
        %v756 = vmax.f32 %v724, 0.0
        %v757 = vmax.f32 %v725, 0.0
        %v758 = vmax.f32 %v726, 0.0
        %v759 = vmax.f32 %v727, 0.0
        %v760 = vmax.f32 %v728, 0.0
        %v761 = vmax.f32 %v729, 0.0
        %v762 = vmax.f32 %v730, 0.0
        %v763 = vmax.f32 %v731, 0.0
        %v764 = vmax.f32 %v732, 0.0
        %v765 = vmax.f32 %v733, 0.0
        %v766 = vmax.f32 %v734, 0.0
        %v767 = vmax.f32 %v735, 0.0
        %v768 = vmax.f32 %v736, 0.0
        %v769 = vmax.f32 %v737, 0.0
        %v770 = vmax.f32 %v738, 0.0
        %v771 = vmax.f32 %v739, 0.0
        %v772 = vmax.f32 %v740, 0.0
        %v773 = vmax.f32 %v741, 0.0
        %v774 = vmax.f32 %v742, 0.0
        %v775 = vmax.f32 %v743, 0.0
        %v776 = vmax.f32 %v744, 0.0
        %v777 = vmax.f32 %v745, 0.0
        %v778 = vld [vmem:[%s3] sm:$0xff]
        %v779 = vld [vmem:[%s3 + $0x8] sm:$0xff]
        %v780 = vld [vmem:[%s3 + $0x10] sm:$0xff]
        %v781 = vld [vmem:[%s3 + $0x18] sm:$0xff]
        %v782 = vld [vmem:[%s4] sm:$0xff]
        %v783 = vld [vmem:[%s4 + $0x8] sm:$0xff]
        %v784 = vld [vmem:[%s4 + $0x10] sm:$0xff]
        %v785 = vld [vmem:[%s4 + $0x18] sm:$0xff]
        %787 = vset.pattern.permute.xlu0 0
        %788 = vperm.xlu0 %787, %v782
        %v789 = vpop.permute.xlu0 %788
        %792 = vset.pattern.permute.xlu0 0
        %793 = vperm.xlu0 %792, %v783
        %v794 = vpop.permute.xlu0 %793
        %797 = vset.pattern.permute.xlu0 0
        %798 = vperm.xlu0 %797, %v784
        %v799 = vpop.permute.xlu0 %798
        %802 = vset.pattern.permute.xlu0 0
        %803 = vperm.xlu0 %802, %v785
        %v804 = vpop.permute.xlu0 %803
        %vm806 = vcmask 523264
        %v808 = vsel %vm806, %v778, 0
        %v811 = vsel %vm806, %v779, 0
        %v814 = vsel %vm806, %v780, 0
        %v817 = vsel %vm806, %v781, 0
        %819 = vmatprep.subr.mxu0 %v747
        %820 = vmatpush1.msra.mxu0 %v746
        %821 = vmatprep.subr.mxu0 %v751
        %822 = vmatpush1.msra.mxu0 %v750
        %823 = vmatprep.subr.mxu0 %v755
        %824 = vmatpush1.msra.mxu0 %v754
        %825 = vmatprep.subr.mxu0 %v759
        %826 = vmatpush1.msra.mxu0 %v758
        %827 = vmatprep.subr.mxu0 %v763
        %828 = vmatpush1.msra.mxu0 %v762
        %829 = vmatprep.subr.mxu0 %v767
        %830 = vmatpush1.msra.mxu0 %v766
        %831 = vmatprep.subr.mxu0 %v771
        %832 = vmatpush1.msra.mxu0 %v770
        %833 = vmatprep.subr.mxu0 %v775
        %834 = vmatpush1.msra.mxu0 %v774
        %835 = vmatprep.subr.mxu0 0.0
        %836 = vmatpush1.msra.mxu0 0.0
        %837 = vmatprep.subr.mxu0 0.0
        %838 = vmatpush1.msra.mxu0 0.0
        %839 = vmatprep.subr.mxu0 0.0
        %840 = vmatpush1.msra.mxu0 0.0
        %841 = vmatprep.subr.mxu0 0.0
        %842 = vmatpush1.msra.mxu0 0.0
        %843 = vmatprep.subr.mxu0 0.0
        %844 = vmatpush1.msra.mxu0 0.0
        %845 = vmatprep.subr.mxu0 0.0
        %846 = vmatpush1.msra.mxu0 0.0
        %847 = vmatprep.subr.mxu0 0.0
        %848 = vmatpush1.msra.mxu0 0.0
        %849 = vmatprep.subr.mxu0 0.0
        %850 = vmatpush1.msra.mxu0 0.0
        %851 = vmatprep.subr.mxu0 0.0
        %852 = vmatpush1.msra.mxu0 0.0
        %853 = vmatprep.subr.mxu0 0.0
        %854 = vmatpush1.msra.mxu0 0.0
        %855 = vmatprep.subr.mxu0 0.0
        %856 = vmatpush1.msra.mxu0 0.0
        %857 = vmatprep.subr.mxu0 0.0
        %858 = vmatpush1.msra.mxu0 0.0
        %859 = vmatprep.subr.mxu0 0.0
        %860 = vmatpush1.msra.mxu0 0.0
        %861 = vmatprep.subr.mxu0 0.0
        %862 = vmatpush1.msra.mxu0 0.0
        %863 = vmatprep.subr.mxu0 0.0
        %864 = vmatpush1.msra.mxu0 0.0
        %865 = vmatprep.subr.mxu0 0.0
        %866 = vmatpush1.msra.mxu0 0.0
        %867 = vmatprep.subr.mxu0 0.0
        %868 = vmatpush1.msra.mxu0 0.0
        %869 = vmatprep.subr.mxu0 0.0
        %870 = vmatpush1.msra.mxu0 0.0
        %871 = vmatprep.subr.mxu0 0.0
        %872 = vmatpush1.msra.mxu0 0.0
        %873 = vmatprep.subr.mxu0 0.0
        %874 = vmatpush1.msra.mxu0 0.0
        %875 = vmatprep.subr.mxu0 0.0
        %876 = vmatpush1.msra.mxu0 0.0
        %877 = vmatprep.subr.mxu0 0.0
        %878 = vmatpush1.msra.mxu0 0.0
        %879 = vmatprep.subr.mxu0 0.0
        %880 = vmatpush1.msra.mxu0 0.0
        %881 = vmatprep.subr.mxu0 0.0
        %882 = vmatpush1.msra.mxu0 0.0
        %883 = vmatprep.mubr.f32.mxu0 0.0
        %884 = vmatmul.mubr.f32.gmra.mrb[0].mxu0 %v808
        %v885 = vpop.f32.mrb[0].mxu0
        %v886 = vadd.f32 %v789, %v885
        %v887 = vpop.f32.mrb[0].mxu0
        %v888 = vadd.f32 %v789, %v887
        %889 = vmatprep.mubr.f32.mxu0 0.0
        %890 = vmatmul.mubr.f32.gmra.mrb[0].mxu0 %v811
        %v891 = vpop.f32.mrb[0].mxu0
        %v892 = vadd.f32 %v794, %v891
        %v893 = vpop.f32.mrb[0].mxu0
        %v894 = vadd.f32 %v794, %v893
        %895 = vmatprep.mubr.f32.mxu0 0.0
        %896 = vmatmul.mubr.f32.gmra.mrb[0].mxu0 %v814
        %v897 = vpop.f32.mrb[0].mxu0
        %v898 = vadd.f32 %v799, %v897
        %v899 = vpop.f32.mrb[0].mxu0
        %v900 = vadd.f32 %v799, %v899
        %901 = vmatprep.mubr.f32.mxu0 0.0
        %902 = vmatmul.mubr.f32.gmra.mrb[0].mxu0 %v817
        %v903 = vpop.f32.mrb[0].mxu0
        %v904 = vadd.f32 %v804, %v903
        %v905 = vpop.f32.mrb[0].mxu0
        %v906 = vadd.f32 %v804, %v905
        %907 = vdwg.mxu0
        %908 = vmatprep.subr.mxu0 %v749
        %909 = vmatpush1.msra.mxu0 %v748
        %910 = vmatprep.subr.mxu0 %v753
        %911 = vmatpush1.msra.mxu0 %v752
        %912 = vmatprep.subr.mxu0 %v757
        %913 = vmatpush1.msra.mxu0 %v756
        %914 = vmatprep.subr.mxu0 %v761
        %915 = vmatpush1.msra.mxu0 %v760
        %916 = vmatprep.subr.mxu0 %v765
        %917 = vmatpush1.msra.mxu0 %v764
        %918 = vmatprep.subr.mxu0 %v769
        %919 = vmatpush1.msra.mxu0 %v768
        %920 = vmatprep.subr.mxu0 %v773
        %921 = vmatpush1.msra.mxu0 %v772
        %922 = vmatprep.subr.mxu0 %v777
        %923 = vmatpush1.msra.mxu0 %v776
        %924 = vmatprep.subr.mxu0 0.0
        %925 = vmatpush1.msra.mxu0 0.0
        %926 = vmatprep.subr.mxu0 0.0
        %927 = vmatpush1.msra.mxu0 0.0
        %928 = vmatprep.subr.mxu0 0.0
        %929 = vmatpush1.msra.mxu0 0.0
        %930 = vmatprep.subr.mxu0 0.0
        %931 = vmatpush1.msra.mxu0 0.0
        %932 = vmatprep.subr.mxu0 0.0
        %933 = vmatpush1.msra.mxu0 0.0
        %934 = vmatprep.subr.mxu0 0.0
        %935 = vmatpush1.msra.mxu0 0.0
        %936 = vmatprep.subr.mxu0 0.0
        %937 = vmatpush1.msra.mxu0 0.0
        %938 = vmatprep.subr.mxu0 0.0
        %939 = vmatpush1.msra.mxu0 0.0
        %940 = vmatprep.subr.mxu0 0.0
        %941 = vmatpush1.msra.mxu0 0.0
        %942 = vmatprep.subr.mxu0 0.0
        %943 = vmatpush1.msra.mxu0 0.0
        %944 = vmatprep.subr.mxu0 0.0
        %945 = vmatpush1.msra.mxu0 0.0
        %946 = vmatprep.subr.mxu0 0.0
        %947 = vmatpush1.msra.mxu0 0.0
        %948 = vmatprep.subr.mxu0 0.0
        %949 = vmatpush1.msra.mxu0 0.0
        %950 = vmatprep.subr.mxu0 0.0
        %951 = vmatpush1.msra.mxu0 0.0
        %952 = vmatprep.subr.mxu0 0.0
        %953 = vmatpush1.msra.mxu0 0.0
        %954 = vmatprep.subr.mxu0 0.0
        %955 = vmatpush1.msra.mxu0 0.0
        %956 = vmatprep.subr.mxu0 0.0
        %957 = vmatpush1.msra.mxu0 0.0
        %958 = vmatprep.subr.mxu0 0.0
        %959 = vmatpush1.msra.mxu0 0.0
        %960 = vmatprep.subr.mxu0 0.0
        %961 = vmatpush1.msra.mxu0 0.0
        %962 = vmatprep.subr.mxu0 0.0
        %963 = vmatpush1.msra.mxu0 0.0
        %964 = vmatprep.subr.mxu0 0.0
        %965 = vmatpush1.msra.mxu0 0.0
        %966 = vmatprep.subr.mxu0 0.0
        %967 = vmatpush1.msra.mxu0 0.0
        %968 = vmatprep.subr.mxu0 0.0
        %969 = vmatpush1.msra.mxu0 0.0
        %970 = vmatprep.subr.mxu0 0.0
        %971 = vmatpush1.msra.mxu0 0.0
        %972 = vmatprep.mubr.f32.mxu0 0.0
        %973 = vmatmul.mubr.f32.gmra.mrb[0].mxu0 %v808
        %v974 = vpop.f32.mrb[0].mxu0
        %v975 = vadd.f32 %v789, %v974
        %v976 = vpop.f32.mrb[0].mxu0
        %v977 = vadd.f32 %v789, %v976
        %978 = vmatprep.mubr.f32.mxu0 0.0
        %979 = vmatmul.mubr.f32.gmra.mrb[0].mxu0 %v811
        %v980 = vpop.f32.mrb[0].mxu0
        %v981 = vadd.f32 %v794, %v980
        %v982 = vpop.f32.mrb[0].mxu0
        %v983 = vadd.f32 %v794, %v982
        %984 = vmatprep.mubr.f32.mxu0 0.0
        %985 = vmatmul.mubr.f32.gmra.mrb[0].mxu0 %v814
        %v986 = vpop.f32.mrb[0].mxu0
        %v987 = vadd.f32 %v799, %v986
        %v988 = vpop.f32.mrb[0].mxu0
        %v989 = vadd.f32 %v799, %v988
        %990 = vmatprep.mubr.f32.mxu0 0.0
        %991 = vmatmul.mubr.f32.gmra.mrb[0].mxu0 %v817
        %v992 = vpop.f32.mrb[0].mxu0
        %v993 = vadd.f32 %v804, %v992
        %v994 = vpop.f32.mrb[0].mxu0
        %v995 = vadd.f32 %v804, %v994
        %996 = vdwg.mxu0
        %v997 = vmax.f32 %v886, 0.0
        %v998 = vmax.f32 %v888, 0.0
        %v999 = vmax.f32 %v975, 0.0
        %v1000 = vmax.f32 %v977, 0.0
        %v1001 = vmax.f32 %v892, 0.0
        %v1002 = vmax.f32 %v894, 0.0
        %v1003 = vmax.f32 %v981, 0.0
        %v1004 = vmax.f32 %v983, 0.0
        %v1005 = vmax.f32 %v898, 0.0
        %v1006 = vmax.f32 %v900, 0.0
        %v1007 = vmax.f32 %v987, 0.0
        %v1008 = vmax.f32 %v989, 0.0
        %v1009 = vmax.f32 %v904, 0.0
        %v1010 = vmax.f32 %v906, 0.0
        %v1011 = vmax.f32 %v993, 0.0
        %v1012 = vmax.f32 %v995, 0.0
        %v1013 = vld [vmem:[%s5] sm:$0xff]
        %v1014 = vld [vmem:[%s5 + $0x8] sm:$0xff]
        %v1015 = vld [vmem:[%s5 + $0x10] sm:$0xff]
        %v1016 = vld [vmem:[%s5 + $0x18] sm:$0xff]
        %1018 = vset.pattern.permute.xlu0 0
        %1019 = vperm.xlu0 %1018, %v1013
        %v1020 = vpop.permute.xlu0 %1019
        %1023 = vset.pattern.permute.xlu0 0
        %1024 = vperm.xlu0 %1023, %v1014
        %v1025 = vpop.permute.xlu0 %1024
        %1028 = vset.pattern.permute.xlu0 0
        %1029 = vperm.xlu0 %1028, %v1015
        %v1030 = vpop.permute.xlu0 %1029
        %1033 = vset.pattern.permute.xlu0 0
        %1034 = vperm.xlu0 %1033, %v1016
        %v1035 = vpop.permute.xlu0 %1034
        %v1037 = vmul.f32 %v1020, %v997
        %v1038 = vmul.f32 %v1020, %v998
        %v1039 = vmul.f32 %v1020, %v999
        %v1040 = vmul.f32 %v1020, %v1000
        %v1041 = vmul.f32 %v1025, %v1001
        %v1042 = vmul.f32 %v1025, %v1002
        %v1043 = vmul.f32 %v1025, %v1003
        %v1044 = vmul.f32 %v1025, %v1004
        %v1045 = vmul.f32 %v1030, %v1005
        %v1046 = vmul.f32 %v1030, %v1006
        %v1047 = vmul.f32 %v1030, %v1007
        %v1048 = vmul.f32 %v1030, %v1008
        %v1049 = vmul.f32 %v1035, %v1009
        %v1050 = vmul.f32 %v1035, %v1010
        %v1051 = vmul.f32 %v1035, %v1011
        %v1052 = vmul.f32 %v1035, %v1012
        %v1053 = vadd.f32 %v1037, %v1041
        %v1054 = vadd.f32 %v1053, %v1045
        %v1055 = vadd.f32 %v1054, %v1049
        %v1056 = vrot.slane %v1055, 4
        %v1057 = vadd.f32 %v1055, %v1056
        %v1058 = vrot.slane %v1057, 2
        %v1059 = vadd.f32 %v1057, %v1058
        %v1060 = vrot.slane %v1059, 1
        %v1061 = vadd.f32 %v1059, %v1060
        %v1062 = vadd.f32 %v1038, %v1042
        %v1063 = vadd.f32 %v1062, %v1046
        %v1064 = vadd.f32 %v1063, %v1050
        %v1065 = vrot.slane %v1064, 4
        %v1066 = vadd.f32 %v1064, %v1065
        %v1067 = vrot.slane %v1066, 2
        %v1068 = vadd.f32 %v1066, %v1067
        %v1069 = vrot.slane %v1068, 1
        %v1070 = vadd.f32 %v1068, %v1069
        %v1071 = vadd.f32 %v1039, %v1043
        %v1072 = vadd.f32 %v1071, %v1047
        %v1073 = vadd.f32 %v1072, %v1051
        %v1074 = vrot.slane %v1073, 4
        %v1075 = vadd.f32 %v1073, %v1074
        %v1076 = vrot.slane %v1075, 2
        %v1077 = vadd.f32 %v1075, %v1076
        %v1078 = vrot.slane %v1077, 1
        %v1079 = vadd.f32 %v1077, %v1078
        %v1080 = vadd.f32 %v1040, %v1044
        %v1081 = vadd.f32 %v1080, %v1048
        %v1082 = vadd.f32 %v1081, %v1052
        %v1083 = vrot.slane %v1082, 4
        %v1084 = vadd.f32 %v1082, %v1083
        %v1085 = vrot.slane %v1084, 2
        %v1086 = vadd.f32 %v1084, %v1085
        %v1087 = vrot.slane %v1086, 1
        %v1088 = vadd.f32 %v1086, %v1087
        %v1089 = vld [vmem:[#allocation2] sm:$0x1]
        %1091 = vset.pattern.permute.xlu0 0
        %1092 = vperm.xlu0 %1091, %v1089
        %v1093 = vpop.permute.xlu0 %1092
        %v1095 = vlaneseq
        %v1096 = vshrl.u32 %v1095, 7
        %v1097 = vsub.s32 0, %v1096
        %v1098 = vrot.slane %v1093, %v1097
        %v1099 = vadd.f32 %v1061, %v1098
        %v1100 = vadd.f32 %v1070, %v1098
        %v1101 = vadd.f32 %v1079, %v1098
        %v1102 = vadd.f32 %v1088, %v1098
        %v1107 = vcombine.low %v1099, %v1100
        %v1108 = vcombine.low %v1101, %v1102
        %v1110 = vunpack.c.l.s4 1966171168
        %v1111 = vunpack.c.0.s8 %v1110
        %v1112 = vlaneseq
        %v1113 = vshrl.u32 %v1112, 7
        %v1114 = vsub.s32 %v1111, %v1113
        %v1115 = vrot.slane %v1107, %v1114
        %v1117 = vunpack.c.l.s4 1966171168
        %v1118 = vunpack.c.0.s8 %v1117
        %v1119 = vlaneseq
        %v1120 = vshrl.u32 %v1119, 7
        %v1121 = vsub.s32 %v1118, %v1120
        %v1122 = vrot.slane %v1108, %v1121
        %v1123 = vcombine.low %v1115, %v1122
        %v1125 = vunpack.c.l.s4 1966171168
        %v1126 = vunpack.c.0.s8 %v1125
        %v1127 = vlaneseq
        %v1128 = vshrl.u32 %v1127, 7
        %v1129 = vsub.s32 %v1126, %v1128
        %v1130 = vrot.slane %v1123, %v1129
        %v1132 = vlaneseq
        %vm1133 = vcmp.ge.s32.totalorder %v1132, 0
        %vm1134 = vcmp.lt.s32.totalorder %v1132, 512
        %vm1135 = vmand %vm1133, %vm1134
        %1136 = vst.msk [vmem:[%s274] sm:$0xf] %vm1135, %v1130
        %s1137 = sand.u32 %s183, 1
        %s1138 = scalar_lea.sflag [#allocation4], %s1137
        %s1139 = sand.u32 %s183, 1
        %s1140 = smul.addr %s1139, 4
        %s1141 = scalar_lea.vmem [#allocation3], %s1140
        // Predicated region
        $region49: #{reg3d_forward.1} parent=47 // pred_check
          %p1142 = pneg %p193
        $region50: #{reg3d_forward.1} parent=47 // pred_check_branch
          %1144 = sbr.rel (%p1142) target = $region52
        $region51: #{reg3d_forward.1} parent=47 // pred_region
          %s1145 = smul.u32 4, %s23
          %s1147 = ssub.s32 64, 64
          %1148 = vsyncadd %s1138, %s1147
          %s1149 = smul.addr %s1145, 16
          %s1150 = scalar_lea.hbm %s7, %s1149
          %s1152 = sshll.u32 %s1141, 4
          %s1153 = int_to_ptr.vmem [resolvable:$true] %s1152
          %1155 = dma.vmem_to_hbm [thread:$0]  %s1153, 64, %s1150, %s1138
        $region52: #{reg3d_forward.1} parent=47 // pred_fallthru
          _
      $region48: #{reg3d_forward.1} parent=5 // pred_fallthru
        _
      %p1156 = scmp.le.s32.totalorder 2, %s18
      // Predicated region
      $region53: #{reg3d_forward.1} parent=5 // pred_check
        %p1157 = pneg %p1156
      $region54: #{reg3d_forward.1} parent=5 // pred_check_branch
        %1159 = sbr.rel (%p1157) target = $region56
      $region55: #{reg3d_forward.1} parent=5 // pred_region
        %s1160 = ssub.s32 %s18, 2
        // Predicated region
        $region57: #{reg3d_forward.1} parent=55 // pred_check
          %p1161 = pneg %p199
        $region58: #{reg3d_forward.1} parent=55 // pred_check_branch
          %1163 = sbr.rel (%p1161) target = $region60
        $region59: #{reg3d_forward.1} parent=55 // pred_region
          %s1164 = sand.u32 %s184, 1
          %s1165 = scalar_lea.sflag [#allocation4], %s1164
          %s1166 = sand.u32 %s184, 1
          %s1167 = smul.addr %s1166, 4
          %s1168 = scalar_lea.vmem [#allocation3], %s1167
          %1169 = dma.done %s1165, 64
        $region60: #{reg3d_forward.1} parent=55 // pred_fallthru
          _
      $region56: #{reg3d_forward.1} parent=5 // pred_fallthru
        _
    $region6: #{reg3d_forward.1} parent=1 // loop_footer
      %s22 = sadd.s32 1, %s18
    $region7: #{reg3d_forward.1} parent=1 // loop_footer_branch
      %17 = sbr.rel target = $region3
    $region8: #{reg3d_forward.1} parent=1 // loop_exit
      _
    %1170 = vsyncpa [#allocation4], 1
    %s1171 = scalar_lea.sflag [#allocation4], 1
    %1172 = vsyncpa %s1171, 1

</llo_original>
